<compile_context>
chip_gen: v6e
topology: v6e:2x2x1
jax: 0.10.0
libtpu: 0.0.40
codegen_flags: <defaults>
</compile_context>

<pallas_src>
import functools

import jax
import jax.numpy as jnp
from jax.experimental import pallas as pl
from jax.experimental.pallas import tpu as pltpu

D_IN = 768    # BERT pooled-output width
D_H = 18      # l1 out features
D_OUT = 6     # l2 out features
LANES = 128   # lane width of the packed output slab
X0_OFF = 32   # x0 lives in lanes [32, 38) of the packed output


def _round_up(n, m):
    return (n + m - 1) // m * m


def pack_params(w1, b1, w2, b2):
    """One-time lane padding of the head parameters (hoisted out of the hot path).

    w2 is packed with an identity block on [0:18, 0:18] so the second MXU pass
    both forwards h (lanes 0:18) and computes x0 (lanes 32:38) in one shot.
    Rows 18:128 stay zero so the sigmoid(0)=0.5 junk lanes of h contribute nothing.
    """
    w1_p = jnp.zeros((D_IN, LANES), jnp.bfloat16).at[:, :D_H].set(
        w1.astype(jnp.bfloat16))
    b1_p = jnp.zeros((1, LANES), jnp.float32).at[:, :D_H].set(
        b1.reshape(1, D_H).astype(jnp.float32))
    w2_p = jnp.zeros((LANES, LANES), jnp.float32)
    w2_p = w2_p.at[:D_H, :D_H].set(jnp.eye(D_H, dtype=jnp.float32))
    w2_p = w2_p.at[:D_H, X0_OFF:X0_OFF + D_OUT].set(w2.astype(jnp.float32))
    w2_p = w2_p.astype(jnp.bfloat16)
    b2_p = jnp.zeros((1, LANES), jnp.float32).at[:, X0_OFF:X0_OFF + D_OUT].set(
        b2.reshape(1, D_OUT).astype(jnp.float32))
    return w1_p, b1_p, w2_p, b2_p


def _head_kernel(x_ref, w1_ref, b1_ref, w2_ref, b2_ref, out_ref):
    # x_ref : [TB, 768]  f32  (cast to bf16 in-kernel -> no separate HBM cast pass)
    # w1_ref: [768, 128] bf16 (cols 0:18 = l1 weight, rest zero)     -- VMEM resident
    # b1_ref: [1, 128]   f32  (lanes 0:18 = l1 bias, rest zero)      -- VMEM resident
    # w2_ref: [128, 128] bf16 (identity on [0:18,0:18]; l2 weight on
    #                          [0:18,32:38]; all other entries zero) -- VMEM resident
    # b2_ref: [1, 128]   f32  (lanes 32:38 = l2 bias, rest zero)     -- VMEM resident
    # out_ref:[TB, 128]  bf16 packed slab: h in lanes 0:18, x0 in lanes 32:38
    x = x_ref[...].astype(jnp.bfloat16)

    # Linear(768 -> 18): bf16 operands on the MXU, f32 accumulation.
    h_pre = jnp.dot(x, w1_ref[...], preferred_element_type=jnp.float32) + b1_ref[...]

    # sigmoid = 1 / (1 + exp(-h)): exp + approx reciprocal both run on the EUP.
    h = pl.reciprocal(1.0 + jnp.exp(-h_pre), approx=True)        # [TB, 128]

    # Second MXU pass: identity block copies h into lanes 0:18, l2 weight block
    # produces x0 in lanes 32:38.  Zero rows 18:128 kill the padded 0.5 lanes.
    out = jnp.dot(h.astype(jnp.bfloat16), w2_ref[...],
                  preferred_element_type=jnp.float32) + b2_ref[...]

    # Single unmasked, 128-lane-aligned store of the packed slab.
    out_ref[...] = out.astype(out_ref.dtype)


@functools.partial(jax.jit, static_argnames=("tile_b",))
def fn_cls_head(x, w1_p, b1_p, w2_p, b2_p, tile_b=1024):
    """x: [B, 768] pooled BERT output. (w1_p, b1_p, w2_p, b2_p) = pack_params(...).
    Returns (sigmoid(l1(x)), l2(sigmoid(l1(x)))) as f32."""
    B = x.shape[0]
    x = x.astype(jnp.float32)

    # Minimal sublane pad only (f32 sublane tile = 8 rows); NOT padded to tile_b.
    b_pad = _round_up(B, 8)
    if b_pad != B:
        x = jnp.pad(x, ((0, b_pad - B), (0, 0)))

    # Tile selection: big tiles amortize the ~0.35us/step grid overhead, but keep
    # >= 2 grid steps whenever possible so "parallel" megacore sharding (v7x) has
    # work for both TensorCores.  Per-tile VMEM at tile_b=1024:
    #   x 3 MiB + out 0.25 MiB (both double-buffered) + weights < 0.25 MiB  << 32 MiB.
    tb = min(tile_b, b_pad)
    if b_pad >= 16:
        tb = min(tb, _round_up(pl.cdiv(b_pad, 2), 8))
    tb = max(tb, 8)
    grid = (pl.cdiv(b_pad, tb),)

    cost = pl.CostEstimate(
        flops=2 * b_pad * D_IN * LANES + 2 * b_pad * LANES * LANES,
        transcendentals=b_pad * LANES,
        bytes_accessed=(b_pad * D_IN * 4                      # f32 activations in
                        + w1_p.size * 2 + w2_p.size * 2       # bf16 weights
                        + (b1_p.size + b2_p.size) * 4         # f32 biases
                        + b_pad * LANES * 2),                 # bf16 packed output
    )

    packed = pl.pallas_call(
        _head_kernel,
        out_shape=jax.ShapeDtypeStruct((b_pad, LANES), jnp.bfloat16),
        grid=grid,
        in_specs=[
            pl.BlockSpec((tb, D_IN), lambda i: (i, 0)),       # x: tiled on batch
            pl.BlockSpec((D_IN, LANES), lambda i: (0, 0)),    # w1: resident
            pl.BlockSpec((1, LANES), lambda i: (0, 0)),       # b1: resident
            pl.BlockSpec((LANES, LANES), lambda i: (0, 0)),   # w2: resident
            pl.BlockSpec((1, LANES), lambda i: (0, 0)),       # b2: resident
        ],
        out_specs=pl.BlockSpec((tb, LANES), lambda i: (i, 0)),
        compiler_params=pltpu.CompilerParams(
            dimension_semantics=("parallel",)),
        cost_estimate=cost,
    )(x, w1_p, b1_p, w2_p, b2_p)

    h = packed[:B, :D_H].astype(jnp.float32)
    x0 = packed[:B, X0_OFF:X0_OFF + D_OUT].astype(jnp.float32)
    return h, x0


def _reference(x, w1, b1, w2, b2):
    h = jax.nn.sigmoid(x @ w1 + b1)
    return h, h @ w2 + b2


if __name__ == "__main__":
    key = jax.random.PRNGKey(0)
    k_x, k_w1, k_b1, k_w2, k_b2 = jax.random.split(key, 5)

    B = 8  # small demo batch
    # Deterministic synthetic parameters (shapes from the module __init__).
    x = jax.random.normal(k_x, (B, D_IN), dtype=jnp.float32)
    w1 = jax.random.normal(k_w1, (D_IN, D_H), dtype=jnp.float32) * 0.02
    b1 = jax.random.normal(k_b1, (1, D_H), dtype=jnp.float32) * 0.02
    w2 = jax.random.normal(k_w2, (D_H, D_OUT), dtype=jnp.float32) * 0.02
    b2 = jax.random.normal(k_b2, (1, D_OUT), dtype=jnp.float32) * 0.02

    # Pack (lane-pad) the head parameters ONCE, outside the per-call hot path.
    params_packed = pack_params(w1, b1, w2, b2)

    h, x0 = fn_cls_head(x, *params_packed)
    jax.block_until_ready((h, x0))

    # Correctness check against a plain-JAX f32 reference of the same head.
    # Tolerance loosened for bf16 matmuls + approx-reciprocal sigmoid + bf16 slab.
    h_ref, x0_ref = _reference(x, w1, b1, w2, b2)
    assert h.shape == (B, D_H) and x0.shape == (B, D_OUT)
    assert jnp.allclose(h, h_ref, atol=2e-2), "sigmoid(l1) mismatch"
    assert jnp.allclose(x0, x0_ref, atol=2e-2), "l2 output mismatch"

    print("KERNEL_OK")
</pallas_src>

<mosaic_0001>
module attributes {stable_mosaic.version = 11 : i64} {
  func.func @_head_kernel(%arg0: i32, %arg1: memref<8x768xf32, #tpu.memory_space<vmem>>, %arg2: memref<768x128xbf16, #tpu.memory_space<vmem>>, %arg3: memref<1x128xf32, #tpu.memory_space<vmem>>, %arg4: memref<128x128xbf16, #tpu.memory_space<vmem>>, %arg5: memref<1x128xf32, #tpu.memory_space<vmem>>, %arg6: memref<8x128xbf16, #tpu.memory_space<vmem>>) attributes {dimension_semantics = [#tpu.dimension_semantics<parallel>], iteration_bounds = array<i64: 1>, scalar_prefetch = 0 : i64, scratch_operands = 0 : i64, tpu.core_type = #tpu.core_type<tc>, window_params = [{transform_indices = @transform_0, window_bounds = array<i64: 8, 768>}, {pipeline_mode = #tpu.pipeline_mode<synchronous>, transform_indices = @transform_1, window_bounds = array<i64: 768, 128>}, {pipeline_mode = #tpu.pipeline_mode<synchronous>, transform_indices = @transform_2, window_bounds = array<i64: 1, 128>}, {pipeline_mode = #tpu.pipeline_mode<synchronous>, transform_indices = @transform_3, window_bounds = array<i64: 128, 128>}, {pipeline_mode = #tpu.pipeline_mode<synchronous>, transform_indices = @transform_4, window_bounds = array<i64: 1, 128>}, {transform_indices = @transform_5, window_bounds = array<i64: 8, 128>}]} {
    %c0 = arith.constant 0 : index
    %c0_0 = arith.constant 0 : index
    %0 = vector.load %arg1[%c0, %c0_0] : memref<8x768xf32, #tpu.memory_space<vmem>>, vector<8x768xf32>
    %1 = arith.truncf %0 : vector<8x768xf32> to vector<8x768xbf16>
    %c0_1 = arith.constant 0 : index
    %c0_2 = arith.constant 0 : index
    %2 = vector.load %arg2[%c0_1, %c0_2] : memref<768x128xbf16, #tpu.memory_space<vmem>>, vector<768x128xbf16>
    %cst = arith.constant dense<0.000000e+00> : vector<8x128xf32>
    %3 = tpu.matmul %1, %2, %cst {dimension_numbers = #tpu.dot_dimension_numbers<[1], [0], [0], [1], [0, 0, 1, 1], [], []>} : vector<8x768xbf16>, vector<768x128xbf16>, vector<8x128xf32> -> vector<8x128xf32>
    %c0_3 = arith.constant 0 : index
    %c0_4 = arith.constant 0 : index
    %4 = vector.load %arg3[%c0_3, %c0_4] : memref<1x128xf32, #tpu.memory_space<vmem>>, vector<1x128xf32>
    %5 = vector.broadcast %4 : vector<1x128xf32> to vector<8x128xf32>
    %6 = arith.addf %3, %5 : vector<8x128xf32>
    %cst_5 = arith.constant 0.000000e+00 : f32
    %7 = vector.broadcast %cst_5 : f32 to vector<8x128xf32>
    %8 = arith.subf %7, %6 : vector<8x128xf32>
    %9 = math.exp %8 : vector<8x128xf32>
    %cst_6 = arith.constant 1.000000e+00 : f32
    %10 = vector.broadcast %cst_6 : f32 to vector<8x128xf32>
    %11 = arith.addf %10, %9 : vector<8x128xf32>
    %12 = tpu.reciprocal %11 {approx = true} : vector<8x128xf32> -> vector<8x128xf32>
    %13 = arith.truncf %12 : vector<8x128xf32> to vector<8x128xbf16>
    %c0_7 = arith.constant 0 : index
    %c0_8 = arith.constant 0 : index
    %14 = vector.load %arg4[%c0_7, %c0_8] : memref<128x128xbf16, #tpu.memory_space<vmem>>, vector<128x128xbf16>
    %cst_9 = arith.constant dense<0.000000e+00> : vector<8x128xf32>
    %15 = tpu.matmul %13, %14, %cst_9 {dimension_numbers = #tpu.dot_dimension_numbers<[1], [0], [0], [1], [0, 0, 1, 1], [], []>} : vector<8x128xbf16>, vector<128x128xbf16>, vector<8x128xf32> -> vector<8x128xf32>
    %c0_10 = arith.constant 0 : index
    %c0_11 = arith.constant 0 : index
    %16 = vector.load %arg5[%c0_10, %c0_11] : memref<1x128xf32, #tpu.memory_space<vmem>>, vector<1x128xf32>
    %17 = vector.broadcast %16 : vector<1x128xf32> to vector<8x128xf32>
    %18 = arith.addf %15, %17 : vector<8x128xf32>
    %19 = arith.truncf %18 : vector<8x128xf32> to vector<8x128xbf16>
    %c0_12 = arith.constant 0 : index
    %c0_13 = arith.constant 0 : index
    %20 = vector.load %arg6[%c0_12, %c0_13] : memref<8x128xbf16, #tpu.memory_space<vmem>>, vector<8x128xbf16>
    tpu.vector_store %arg6[%c0_12, %c0_13], %19 {strides = array<i32>} : memref<8x128xbf16, #tpu.memory_space<vmem>>, vector<8x128xbf16>,
    return
  }
  func.func @transform_0(%arg0: i32) -> (i32, i32) {
    %c0_i32 = arith.constant 0 : i32
    %c0_i32_0 = arith.constant 0 : i32
    return %arg0, %c0_i32 : i32, i32
  }
  func.func @transform_1(%arg0: i32) -> (i32, i32) {
    %c0_i32 = arith.constant 0 : i32
    %c0_i32_0 = arith.constant 0 : i32
    %c0_i32_1 = arith.constant 0 : i32
    return %c0_i32, %c0_i32_0 : i32, i32
  }
  func.func @transform_2(%arg0: i32) -> (i32, i32) {
    %c0_i32 = arith.constant 0 : i32
    %c0_i32_0 = arith.constant 0 : i32
    %c0_i32_1 = arith.constant 0 : i32
    return %c0_i32, %c0_i32_0 : i32, i32
  }
  func.func @transform_3(%arg0: i32) -> (i32, i32) {
    %c0_i32 = arith.constant 0 : i32
    %c0_i32_0 = arith.constant 0 : i32
    %c0_i32_1 = arith.constant 0 : i32
    return %c0_i32, %c0_i32_0 : i32, i32
  }
  func.func @transform_4(%arg0: i32) -> (i32, i32) {
    %c0_i32 = arith.constant 0 : i32
    %c0_i32_0 = arith.constant 0 : i32
    %c0_i32_1 = arith.constant 0 : i32
    return %c0_i32, %c0_i32_0 : i32, i32
  }
  func.func @transform_5(%arg0: i32) -> (i32, i32) {
    %c0_i32 = arith.constant 0 : i32
    %c0_i32_0 = arith.constant 0 : i32
    return %arg0, %c0_i32 : i32, i32
  }
}

</mosaic_0001>

<llo_original>
// kernel: fn_cls_head.1
$region0: #{fn_cls_head.1}
  #allocation0 [shape = 'u32[]', space=smem, size = 0x4, offset = 0x4, fixed_abs, tag = 'smem constant byte address 0x4 - core index']
  #allocation1 [shape = 'u32[144,128]{1,0:T(1,128)}', space=vmem, size = 0x12000, scoped, tag = 'internal scratch']
  %s0 = inlined_call_operand.hbm [shape: f32[8,768], index: 0, kind: input, shape index: {}]
  %s1 = inlined_call_operand.hbm [shape: bf16[768,128], index: 1, kind: input, shape index: {}]
  %s2 = inlined_call_operand.vmem [shape: f32[1,128], index: 2, kind: input, shape index: {}]
  %s3 = inlined_call_operand.hbm [shape: bf16[128,128], index: 3, kind: input, shape index: {}]
  %s4 = inlined_call_operand.vmem [shape: f32[1,128], index: 4, kind: input, shape index: {}]
  %s5 = inlined_call_operand.vmem [shape: bf16[8,128], index: 5, kind: output, shape index: {}]
  %s6 = sld [smem:[#allocation0]]
  $region42: #{fn_cls_head.1} parent=0
    _
  %s8 = ssub.s32 1, %s6
  %s9 = scalar_select 0, %s8, %s6
  $region1: #{fn_cls_head.1} parent=0
    #allocation2 [shape = 'u8[24576]{0}', space=vmem, size = 0x6000, scoped, tag = 'input window, operand 0, single buffered']
    #allocation3 [shape = 's32[1]{0}', space=sflag, size = 0x4, scoped, tag = 'scoped memory for fn_cls_head.1']
    #allocation4 [shape = 'u8[196608]{0}', space=vmem, size = 0x30000, scoped, tag = 'input window, operand 1, single buffered']
    #allocation5 [shape = 's32[1]{0}', space=sflag, size = 0x4, scoped, tag = 'scoped memory for fn_cls_head.1']
    #allocation6 [shape = 'u8[32768]{0}', space=vmem, size = 0x8000, scoped, tag = 'input window, operand 3, single buffered']
    %10 = vsyncpa [#allocation3], 0
    %11 = vsyncpa [#allocation5], 0
    // Predicated region
    $region2: #{fn_cls_head.1} parent=1 // pred_check
      _
    $region3: #{fn_cls_head.1} parent=1 // pred_check_branch
      %13 = sbr.rel (0) target = $region5
    $region4: #{fn_cls_head.1} parent=1 // pred_region
      %s15 = ssub.s32 768, 768
      %16 = vsyncadd [#allocation3], %s15
      %s18 = sshll.u32 [#allocation2], 4
      %s19 = int_to_ptr.vmem [resolvable:$true] %s18
      %21 = dma.hbm_to_vmem [thread:$0]  %s0, 768, %s19, [#allocation3]
    $region5: #{fn_cls_head.1} parent=1 // pred_fallthru
      _
    // Predicated region
    $region6: #{fn_cls_head.1} parent=1 // pred_check
      _
    $region7: #{fn_cls_head.1} parent=1 // pred_check_branch
      %23 = sbr.rel (0) target = $region9
    $region8: #{fn_cls_head.1} parent=1 // pred_region
      %s25 = ssub.s32 6144, 6144
      %26 = vsyncadd [#allocation5], %s25
      %s27 = sshll.u32 [#allocation4], 4
      %s28 = int_to_ptr.vmem [resolvable:$true] %s27
      %33 = dma.hbm_to_vmem [thread:$0]  %s1, 6144, %s28, [#allocation5], 64, 64, 4
    $region9: #{fn_cls_head.1} parent=1 // pred_fallthru
      _
    // Predicated region
    $region10: #{fn_cls_head.1} parent=1 // pred_check
      _
    $region11: #{fn_cls_head.1} parent=1 // pred_check_branch
      %35 = sbr.rel (0) target = $region13
    $region12: #{fn_cls_head.1} parent=1 // pred_region
      _
    $region13: #{fn_cls_head.1} parent=1 // pred_fallthru
      _
    // Predicated region
    $region14: #{fn_cls_head.1} parent=1 // pred_check
      _
    $region15: #{fn_cls_head.1} parent=1 // pred_check_branch
      %37 = sbr.rel (0) target = $region17
    $region16: #{fn_cls_head.1} parent=1 // pred_region
      %s39 = ssub.s32 1024, 1024
      %40 = vsyncadd [#allocation5], %s39
      %s41 = sshll.u32 [#allocation6], 4
      %s42 = int_to_ptr.vmem [resolvable:$true] %s41
      %47 = dma.hbm_to_vmem [thread:$0]  %s3, 1024, %s42, [#allocation5], 64, 64, 4
    $region17: #{fn_cls_head.1} parent=1 // pred_fallthru
      _
    // Predicated region
    $region18: #{fn_cls_head.1} parent=1 // pred_check
      _
    $region19: #{fn_cls_head.1} parent=1 // pred_check_branch
      %49 = sbr.rel (0) target = $region21
    $region20: #{fn_cls_head.1} parent=1 // pred_region
      _
    $region21: #{fn_cls_head.1} parent=1 // pred_fallthru
      _
    // Predicated region
    $region22: #{fn_cls_head.1} parent=1 // pred_check
      _
    $region23: #{fn_cls_head.1} parent=1 // pred_check_branch
      %51 = sbr.rel (0) target = $region25
    $region24: #{fn_cls_head.1} parent=1 // pred_region
      %52 = dma.done [#allocation3], 768
    $region25: #{fn_cls_head.1} parent=1 // pred_fallthru
      _
    // Predicated region
    $region26: #{fn_cls_head.1} parent=1 // pred_check
      _
    $region27: #{fn_cls_head.1} parent=1 // pred_check_branch
      %54 = sbr.rel (0) target = $region29
    $region28: #{fn_cls_head.1} parent=1 // pred_region
      %55 = dma.done [#allocation5], 6144
    $region29: #{fn_cls_head.1} parent=1 // pred_fallthru
      _
    // Predicated region
    $region30: #{fn_cls_head.1} parent=1 // pred_check
      _
    $region31: #{fn_cls_head.1} parent=1 // pred_check_branch
      %57 = sbr.rel (0) target = $region33
    $region32: #{fn_cls_head.1} parent=1 // pred_region
      %58 = dma.done [#allocation5], 1024
    $region33: #{fn_cls_head.1} parent=1 // pred_fallthru
      _
    %v60 = vld [vmem:[#allocation2] sm:$0xff]
    %v61 = vld [vmem:[#allocation2 + $0x8] sm:$0xff]
    %v62 = vld [vmem:[#allocation2 + $0x10] sm:$0xff]
    %v63 = vld [vmem:[#allocation2 + $0x18] sm:$0xff]
    %v64 = vld [vmem:[#allocation2 + $0x20] sm:$0xff]
    %v65 = vld [vmem:[#allocation2 + $0x28] sm:$0xff]
    %v66 = vpack.c.bf16 %v60, %v60
    %v67 = vpack.c.bf16 %v61, %v61
    %v68 = vpack.c.bf16 %v62, %v62
    %v69 = vpack.c.bf16 %v63, %v63
    %v70 = vpack.c.bf16 %v64, %v64
    %v71 = vpack.c.bf16 %v65, %v65
    %v72 = vld [vmem:[#allocation4] sm:$0xf]
    %v73 = vld [vmem:[#allocation4 + $0x4] sm:$0xf]
    %v74 = vld [vmem:[#allocation4 + $0x8] sm:$0xf]
    %v75 = vld [vmem:[#allocation4 + $0xc] sm:$0xf]
    %v76 = vld [vmem:[#allocation4 + $0x10] sm:$0xf]
    %v77 = vld [vmem:[#allocation4 + $0x14] sm:$0xf]
    %v78 = vld [vmem:[#allocation4 + $0x18] sm:$0xf]
    %v79 = vld [vmem:[#allocation4 + $0x1c] sm:$0xf]
    %v80 = vld [vmem:[#allocation4 + $0x20] sm:$0xf]
    %v81 = vld [vmem:[#allocation4 + $0x24] sm:$0xf]
    %v82 = vld [vmem:[#allocation4 + $0x28] sm:$0xf]
    %v83 = vld [vmem:[#allocation4 + $0x2c] sm:$0xf]
    %v84 = vld [vmem:[#allocation4 + $0x30] sm:$0xf]
    %v85 = vld [vmem:[#allocation4 + $0x34] sm:$0xf]
    %v86 = vld [vmem:[#allocation4 + $0x38] sm:$0xf]
    %v87 = vld [vmem:[#allocation4 + $0x3c] sm:$0xf]
    %v88 = vld [vmem:[#allocation4 + $0x40] sm:$0xf]
    %v89 = vld [vmem:[#allocation4 + $0x44] sm:$0xf]
    %v90 = vld [vmem:[#allocation4 + $0x48] sm:$0xf]
    %v91 = vld [vmem:[#allocation4 + $0x4c] sm:$0xf]
    %v92 = vld [vmem:[#allocation4 + $0x50] sm:$0xf]
    %v93 = vld [vmem:[#allocation4 + $0x54] sm:$0xf]
    %v94 = vld [vmem:[#allocation4 + $0x58] sm:$0xf]
    %v95 = vld [vmem:[#allocation4 + $0x5c] sm:$0xf]
    %v96 = vld [vmem:[#allocation4 + $0x60] sm:$0xf]
    %v97 = vld [vmem:[#allocation4 + $0x64] sm:$0xf]
    %v98 = vld [vmem:[#allocation4 + $0x68] sm:$0xf]
    %v99 = vld [vmem:[#allocation4 + $0x6c] sm:$0xf]
    %v100 = vld [vmem:[#allocation4 + $0x70] sm:$0xf]
    %v101 = vld [vmem:[#allocation4 + $0x74] sm:$0xf]
    %v102 = vld [vmem:[#allocation4 + $0x78] sm:$0xf]
    %v103 = vld [vmem:[#allocation4 + $0x7c] sm:$0xf]
    %v104 = vld [vmem:[#allocation4 + $0x80] sm:$0xf]
    %v105 = vld [vmem:[#allocation4 + $0x84] sm:$0xf]
    %v106 = vld [vmem:[#allocation4 + $0x88] sm:$0xf]
    %v107 = vld [vmem:[#allocation4 + $0x8c] sm:$0xf]
    %v108 = vld [vmem:[#allocation4 + $0x90] sm:$0xf]
    %v109 = vld [vmem:[#allocation4 + $0x94] sm:$0xf]
    %v110 = vld [vmem:[#allocation4 + $0x98] sm:$0xf]
    %v111 = vld [vmem:[#allocation4 + $0x9c] sm:$0xf]
    %v112 = vld [vmem:[#allocation4 + $0xa0] sm:$0xf]
    %v113 = vld [vmem:[#allocation4 + $0xa4] sm:$0xf]
    %v114 = vld [vmem:[#allocation4 + $0xa8] sm:$0xf]
    %v115 = vld [vmem:[#allocation4 + $0xac] sm:$0xf]
    %v116 = vld [vmem:[#allocation4 + $0xb0] sm:$0xf]
    %v117 = vld [vmem:[#allocation4 + $0xb4] sm:$0xf]
    %v118 = vld [vmem:[#allocation4 + $0xb8] sm:$0xf]
    %v119 = vld [vmem:[#allocation4 + $0xbc] sm:$0xf]
    %v120 = vld [vmem:[#allocation4 + $0xc0] sm:$0xf]
    %v121 = vld [vmem:[#allocation4 + $0xc4] sm:$0xf]
    %v122 = vld [vmem:[#allocation4 + $0xc8] sm:$0xf]
    %v123 = vld [vmem:[#allocation4 + $0xcc] sm:$0xf]
    %v124 = vld [vmem:[#allocation4 + $0xd0] sm:$0xf]
    %v125 = vld [vmem:[#allocation4 + $0xd4] sm:$0xf]
    %v126 = vld [vmem:[#allocation4 + $0xd8] sm:$0xf]
    %v127 = vld [vmem:[#allocation4 + $0xdc] sm:$0xf]
    %v128 = vld [vmem:[#allocation4 + $0xe0] sm:$0xf]
    %v129 = vld [vmem:[#allocation4 + $0xe4] sm:$0xf]
    %v130 = vld [vmem:[#allocation4 + $0xe8] sm:$0xf]
    %v131 = vld [vmem:[#allocation4 + $0xec] sm:$0xf]
    %v132 = vld [vmem:[#allocation4 + $0xf0] sm:$0xf]
    %v133 = vld [vmem:[#allocation4 + $0xf4] sm:$0xf]
    %v134 = vld [vmem:[#allocation4 + $0xf8] sm:$0xf]
    %v135 = vld [vmem:[#allocation4 + $0xfc] sm:$0xf]
    %v136 = vld [vmem:[#allocation4 + $0x100] sm:$0xf]
    %v137 = vld [vmem:[#allocation4 + $0x104] sm:$0xf]
    %v138 = vld [vmem:[#allocation4 + $0x108] sm:$0xf]
    %v139 = vld [vmem:[#allocation4 + $0x10c] sm:$0xf]
    %v140 = vld [vmem:[#allocation4 + $0x110] sm:$0xf]
    %v141 = vld [vmem:[#allocation4 + $0x114] sm:$0xf]
    %v142 = vld [vmem:[#allocation4 + $0x118] sm:$0xf]
    %v143 = vld [vmem:[#allocation4 + $0x11c] sm:$0xf]
    %v144 = vld [vmem:[#allocation4 + $0x120] sm:$0xf]
    %v145 = vld [vmem:[#allocation4 + $0x124] sm:$0xf]
    %v146 = vld [vmem:[#allocation4 + $0x128] sm:$0xf]
    %v147 = vld [vmem:[#allocation4 + $0x12c] sm:$0xf]
    %v148 = vld [vmem:[#allocation4 + $0x130] sm:$0xf]
    %v149 = vld [vmem:[#allocation4 + $0x134] sm:$0xf]
    %v150 = vld [vmem:[#allocation4 + $0x138] sm:$0xf]
    %v151 = vld [vmem:[#allocation4 + $0x13c] sm:$0xf]
    %v152 = vld [vmem:[#allocation4 + $0x140] sm:$0xf]
    %v153 = vld [vmem:[#allocation4 + $0x144] sm:$0xf]
    %v154 = vld [vmem:[#allocation4 + $0x148] sm:$0xf]
    %v155 = vld [vmem:[#allocation4 + $0x14c] sm:$0xf]
    %v156 = vld [vmem:[#allocation4 + $0x150] sm:$0xf]
    %v157 = vld [vmem:[#allocation4 + $0x154] sm:$0xf]
    %v158 = vld [vmem:[#allocation4 + $0x158] sm:$0xf]
    %v159 = vld [vmem:[#allocation4 + $0x15c] sm:$0xf]
    %v160 = vld [vmem:[#allocation4 + $0x160] sm:$0xf]
    %v161 = vld [vmem:[#allocation4 + $0x164] sm:$0xf]
    %v162 = vld [vmem:[#allocation4 + $0x168] sm:$0xf]
    %v163 = vld [vmem:[#allocation4 + $0x16c] sm:$0xf]
    %v164 = vld [vmem:[#allocation4 + $0x170] sm:$0xf]
    %v165 = vld [vmem:[#allocation4 + $0x174] sm:$0xf]
    %v166 = vld [vmem:[#allocation4 + $0x178] sm:$0xf]
    %v167 = vld [vmem:[#allocation4 + $0x17c] sm:$0xf]
    %v168 = vld [vmem:[%s2] sm:$0x1]
    %v170 = vlaneseq
    %v171 = vshrl.u32 %v170, 7
    %v172 = vsub.s32 0, %v171
    %v173 = vrot.slane %v168, %v172
    %v271 = vunpack.c.l.b16 %v72
    %v272 = vunpack.c.l.b16 %v73
    %v273 = vunpack.c.l.b16 %v74
    %v274 = vunpack.c.l.b16 %v75
    %v275 = vunpack.c.l.b16 %v76
    %v276 = vunpack.c.l.b16 %v77
    %v277 = vunpack.c.l.b16 %v78
    %v278 = vunpack.c.l.b16 %v79
    %v279 = vunpack.c.l.b16 %v80
    %v280 = vunpack.c.l.b16 %v81
    %v281 = vunpack.c.l.b16 %v82
    %v282 = vunpack.c.l.b16 %v83
    %v283 = vunpack.c.l.b16 %v84
    %v284 = vunpack.c.l.b16 %v85
    %v285 = vunpack.c.l.b16 %v86
    %v286 = vunpack.c.l.b16 %v87
    %v287 = vunpack.c.l.b16 %v88
    %v288 = vunpack.c.l.b16 %v89
    %v289 = vunpack.c.l.b16 %v90
    %v290 = vunpack.c.l.b16 %v91
    %v291 = vunpack.c.l.b16 %v92
    %v292 = vunpack.c.l.b16 %v93
    %v293 = vunpack.c.l.b16 %v94
    %v294 = vunpack.c.l.b16 %v95
    %v295 = vunpack.c.l.b16 %v96
    %v296 = vunpack.c.l.b16 %v97
    %v297 = vunpack.c.l.b16 %v98
    %v298 = vunpack.c.l.b16 %v99
    %v299 = vunpack.c.l.b16 %v100
    %v300 = vunpack.c.l.b16 %v101
    %v301 = vunpack.c.l.b16 %v102
    %v302 = vunpack.c.l.b16 %v103
    %v303 = vunpack.c.l.b16 %v104
    %v304 = vunpack.c.l.b16 %v105
    %v305 = vunpack.c.l.b16 %v106
    %v306 = vunpack.c.l.b16 %v107
    %v307 = vunpack.c.l.b16 %v108
    %v308 = vunpack.c.l.b16 %v109
    %v309 = vunpack.c.l.b16 %v110
    %v310 = vunpack.c.l.b16 %v111
    %v311 = vunpack.c.l.b16 %v112
    %v312 = vunpack.c.l.b16 %v113
    %v313 = vunpack.c.l.b16 %v114
    %v314 = vunpack.c.l.b16 %v115
    %v315 = vunpack.c.l.b16 %v116
    %v316 = vunpack.c.l.b16 %v117
    %v317 = vunpack.c.l.b16 %v118
    %v318 = vunpack.c.l.b16 %v119
    %v319 = vunpack.c.l.b16 %v120
    %v320 = vunpack.c.l.b16 %v121
    %v321 = vunpack.c.l.b16 %v122
    %v322 = vunpack.c.l.b16 %v123
    %v323 = vunpack.c.l.b16 %v124
    %v324 = vunpack.c.l.b16 %v125
    %v325 = vunpack.c.l.b16 %v126
    %v326 = vunpack.c.l.b16 %v127
    %v327 = vunpack.c.l.b16 %v128
    %v328 = vunpack.c.l.b16 %v129
    %v329 = vunpack.c.l.b16 %v130
    %v330 = vunpack.c.l.b16 %v131
    %v331 = vunpack.c.l.b16 %v132
    %v332 = vunpack.c.l.b16 %v133
    %v333 = vunpack.c.l.b16 %v134
    %v334 = vunpack.c.l.b16 %v135
    %v335 = vunpack.c.l.b16 %v136
    %v336 = vunpack.c.l.b16 %v137
    %v337 = vunpack.c.l.b16 %v138
    %v338 = vunpack.c.l.b16 %v139
    %v339 = vunpack.c.l.b16 %v140
    %v340 = vunpack.c.l.b16 %v141
    %v341 = vunpack.c.l.b16 %v142
    %v342 = vunpack.c.l.b16 %v143
    %v343 = vunpack.c.l.b16 %v144
    %v344 = vunpack.c.l.b16 %v145
    %v345 = vunpack.c.l.b16 %v146
    %v346 = vunpack.c.l.b16 %v147
    %v347 = vunpack.c.l.b16 %v148
    %v348 = vunpack.c.l.b16 %v149
    %v349 = vunpack.c.l.b16 %v150
    %v350 = vunpack.c.l.b16 %v151
    %v351 = vunpack.c.l.b16 %v152
    %v352 = vunpack.c.l.b16 %v153
    %v353 = vunpack.c.l.b16 %v154
    %v354 = vunpack.c.l.b16 %v155
    %v355 = vunpack.c.l.b16 %v156
    %v356 = vunpack.c.l.b16 %v157
    %v357 = vunpack.c.l.b16 %v158
    %v358 = vunpack.c.l.b16 %v159
    %v359 = vunpack.c.l.b16 %v160
    %v360 = vunpack.c.l.b16 %v161
    %v361 = vunpack.c.l.b16 %v162
    %v362 = vunpack.c.l.b16 %v163
    %v363 = vunpack.c.l.b16 %v164
    %v364 = vunpack.c.l.b16 %v165
    %v365 = vunpack.c.l.b16 %v166
    %v366 = vunpack.c.l.b16 %v167
    %v367 = vpack.c.b16 %v272, %v271
    %v368 = vpack.c.b16 %v274, %v273
    %v369 = vpack.c.b16 %v276, %v275
    %v370 = vpack.c.b16 %v278, %v277
    %v371 = vpack.c.b16 %v280, %v279
    %v372 = vpack.c.b16 %v282, %v281
    %v373 = vpack.c.b16 %v284, %v283
    %v374 = vpack.c.b16 %v286, %v285
    %v375 = vpack.c.b16 %v288, %v287
    %v376 = vpack.c.b16 %v290, %v289
    %v377 = vpack.c.b16 %v292, %v291
    %v378 = vpack.c.b16 %v294, %v293
    %v379 = vpack.c.b16 %v296, %v295
    %v380 = vpack.c.b16 %v298, %v297
    %v381 = vpack.c.b16 %v300, %v299
    %v382 = vpack.c.b16 %v302, %v301
    %v383 = vpack.c.b16 %v304, %v303
    %v384 = vpack.c.b16 %v306, %v305
    %v385 = vpack.c.b16 %v308, %v307
    %v386 = vpack.c.b16 %v310, %v309
    %v387 = vpack.c.b16 %v312, %v311
    %v388 = vpack.c.b16 %v314, %v313
    %v389 = vpack.c.b16 %v316, %v315
    %v390 = vpack.c.b16 %v318, %v317
    %v391 = vpack.c.b16 %v320, %v319
    %v392 = vpack.c.b16 %v322, %v321
    %v393 = vpack.c.b16 %v324, %v323
    %v394 = vpack.c.b16 %v326, %v325
    %v395 = vpack.c.b16 %v328, %v327
    %v396 = vpack.c.b16 %v330, %v329
    %v397 = vpack.c.b16 %v332, %v331
    %v398 = vpack.c.b16 %v334, %v333
    %v399 = vpack.c.b16 %v336, %v335
    %v400 = vpack.c.b16 %v338, %v337
    %v401 = vpack.c.b16 %v340, %v339
    %v402 = vpack.c.b16 %v342, %v341
    %v403 = vpack.c.b16 %v344, %v343
    %v404 = vpack.c.b16 %v346, %v345
    %v405 = vpack.c.b16 %v348, %v347
    %v406 = vpack.c.b16 %v350, %v349
    %v407 = vpack.c.b16 %v352, %v351
    %v408 = vpack.c.b16 %v354, %v353
    %v409 = vpack.c.b16 %v356, %v355
    %v410 = vpack.c.b16 %v358, %v357
    %v411 = vpack.c.b16 %v360, %v359
    %v412 = vpack.c.b16 %v362, %v361
    %v413 = vpack.c.b16 %v364, %v363
    %v414 = vpack.c.b16 %v366, %v365
    %463 = vmatprep.subr.bf16.mxu0 0
    %464 = vmatpush1.bf16.msra.mxu0 %v374
    %465 = vmatprep.subr.bf16.mxu0 0
    %466 = vmatpush1.bf16.msra.mxu0 %v373
    %467 = vmatprep.subr.bf16.mxu0 0
    %468 = vmatpush1.bf16.msra.mxu0 %v372
    %469 = vmatprep.subr.bf16.mxu0 0
    %470 = vmatpush1.bf16.msra.mxu0 %v371
    %471 = vmatprep.subr.bf16.mxu0 0
    %472 = vmatpush1.bf16.msra.mxu0 %v370
    %473 = vmatprep.subr.bf16.mxu0 0
    %474 = vmatpush1.bf16.msra.mxu0 %v369
    %475 = vmatprep.subr.bf16.mxu0 0
    %476 = vmatpush1.bf16.msra.mxu0 %v368
    %477 = vmatprep.subr.bf16.mxu0 0
    %478 = vmatpush1.bf16.msra.mxu0 %v367
    %479 = vmatprep.subr.bf16.mxu0 0
    %480 = vmatpush2.bf16.msra.mxu0 %v382
    %481 = vmatprep.subr.bf16.mxu0 0
    %482 = vmatpush2.bf16.msra.mxu0 %v381
    %483 = vmatprep.subr.bf16.mxu0 0
    %484 = vmatpush2.bf16.msra.mxu0 %v380
    %485 = vmatprep.subr.bf16.mxu0 0
    %486 = vmatpush2.bf16.msra.mxu0 %v379
    %487 = vmatprep.subr.bf16.mxu0 0
    %488 = vmatpush2.bf16.msra.mxu0 %v378
    %489 = vmatprep.subr.bf16.mxu0 0
    %490 = vmatpush2.bf16.msra.mxu0 %v377
    %491 = vmatprep.subr.bf16.mxu0 0
    %492 = vmatpush2.bf16.msra.mxu0 %v376
    %493 = vmatprep.subr.bf16.mxu0 0
    %494 = vmatpush2.bf16.msra.mxu0 %v375
    %495 = vmatprep.mubr.bf16.mxu0 %v67
    %496 = vmatmul.mubr.bf16.gmra.mxu0 %v66
    %v497 = vpop.f32.mrf.mxu0
    %v498 = vadd.f32 %v173, %v497
    %v499 = vpop.f32.mrf.mxu0
    %v500 = vpop.f32.mrf.mxu0
    %v501 = vpop.f32.mrf.mxu0
    %502 = vdwg.mxu0
    %503 = vmatprep.subr.bf16.mxu0 0
    %504 = vmatpush1.bf16.msra.mxu0 %v390
    %505 = vmatprep.subr.bf16.mxu0 0
    %506 = vmatpush1.bf16.msra.mxu0 %v389
    %507 = vmatprep.subr.bf16.mxu0 0
    %508 = vmatpush1.bf16.msra.mxu0 %v388
    %509 = vmatprep.subr.bf16.mxu0 0
    %510 = vmatpush1.bf16.msra.mxu0 %v387
    %511 = vmatprep.subr.bf16.mxu0 0
    %512 = vmatpush1.bf16.msra.mxu0 %v386
    %513 = vmatprep.subr.bf16.mxu0 0
    %514 = vmatpush1.bf16.msra.mxu0 %v385
    %515 = vmatprep.subr.bf16.mxu0 0
    %516 = vmatpush1.bf16.msra.mxu0 %v384
    %517 = vmatprep.subr.bf16.mxu0 0
    %518 = vmatpush1.bf16.msra.mxu0 %v383
    %519 = vmatprep.subr.bf16.mxu0 0
    %520 = vmatpush2.bf16.msra.mxu0 %v398
    %521 = vmatprep.subr.bf16.mxu0 0
    %522 = vmatpush2.bf16.msra.mxu0 %v397
    %523 = vmatprep.subr.bf16.mxu0 0
    %524 = vmatpush2.bf16.msra.mxu0 %v396
    %525 = vmatprep.subr.bf16.mxu0 0
    %526 = vmatpush2.bf16.msra.mxu0 %v395
    %527 = vmatprep.subr.bf16.mxu0 0
    %528 = vmatpush2.bf16.msra.mxu0 %v394
    %529 = vmatprep.subr.bf16.mxu0 0
    %530 = vmatpush2.bf16.msra.mxu0 %v393
    %531 = vmatprep.subr.bf16.mxu0 0
    %532 = vmatpush2.bf16.msra.mxu0 %v392
    %533 = vmatprep.subr.bf16.mxu0 0
    %534 = vmatpush2.bf16.msra.mxu0 %v391
    %535 = vmatprep.mubr.bf16.mxu0 %v69
    %536 = vmatmul.mubr.bf16.gmra.mxu0 %v68
    %v537 = vpop.f32.mrf.mxu0
    %v538 = vadd.f32 %v498, %v537
    %v539 = vpop.f32.mrf.mxu0
    %v540 = vpop.f32.mrf.mxu0
    %v541 = vpop.f32.mrf.mxu0
    %542 = vdwg.mxu0
    %543 = vmatprep.subr.bf16.mxu0 0
    %544 = vmatpush1.bf16.msra.mxu0 %v406
    %545 = vmatprep.subr.bf16.mxu0 0
    %546 = vmatpush1.bf16.msra.mxu0 %v405
    %547 = vmatprep.subr.bf16.mxu0 0
    %548 = vmatpush1.bf16.msra.mxu0 %v404
    %549 = vmatprep.subr.bf16.mxu0 0
    %550 = vmatpush1.bf16.msra.mxu0 %v403
    %551 = vmatprep.subr.bf16.mxu0 0
    %552 = vmatpush1.bf16.msra.mxu0 %v402
    %553 = vmatprep.subr.bf16.mxu0 0
    %554 = vmatpush1.bf16.msra.mxu0 %v401
    %555 = vmatprep.subr.bf16.mxu0 0
    %556 = vmatpush1.bf16.msra.mxu0 %v400
    %557 = vmatprep.subr.bf16.mxu0 0
    %558 = vmatpush1.bf16.msra.mxu0 %v399
    %559 = vmatprep.subr.bf16.mxu0 0
    %560 = vmatpush2.bf16.msra.mxu0 %v414
    %561 = vmatprep.subr.bf16.mxu0 0
    %562 = vmatpush2.bf16.msra.mxu0 %v413
    %563 = vmatprep.subr.bf16.mxu0 0
    %564 = vmatpush2.bf16.msra.mxu0 %v412
    %565 = vmatprep.subr.bf16.mxu0 0
    %566 = vmatpush2.bf16.msra.mxu0 %v411
    %567 = vmatprep.subr.bf16.mxu0 0
    %568 = vmatpush2.bf16.msra.mxu0 %v410
    %569 = vmatprep.subr.bf16.mxu0 0
    %570 = vmatpush2.bf16.msra.mxu0 %v409
    %571 = vmatprep.subr.bf16.mxu0 0
    %572 = vmatpush2.bf16.msra.mxu0 %v408
    %573 = vmatprep.subr.bf16.mxu0 0
    %574 = vmatpush2.bf16.msra.mxu0 %v407
    %575 = vmatprep.mubr.bf16.mxu0 %v71
    %576 = vmatmul.mubr.bf16.gmra.mxu0 %v70
    %v577 = vpop.f32.mrf.mxu0
    %v578 = vadd.f32 %v538, %v577
    %v579 = vpop.f32.mrf.mxu0
    %v580 = vpop.f32.mrf.mxu0
    %v581 = vpop.f32.mrf.mxu0
    %582 = vdwg.mxu0
    %v583 = vsub.f32 0.0, %v578
    %v584 = vmul.f32 %v583, 1.442695
    %v585 = vpow.pop %v584
    %v586 = vadd.f32 %v585, 1.0
    %v587 = vrcp.pop %v586
    %v588 = vpack.c.bf16 %v587, %v587
    %v589 = vld [vmem:[#allocation6] sm:$0xf]
    %v590 = vld [vmem:[#allocation6 + $0x4] sm:$0xf]
    %v591 = vld [vmem:[#allocation6 + $0x8] sm:$0xf]
    %v592 = vld [vmem:[#allocation6 + $0xc] sm:$0xf]
    %v593 = vld [vmem:[#allocation6 + $0x10] sm:$0xf]
    %v594 = vld [vmem:[#allocation6 + $0x14] sm:$0xf]
    %v595 = vld [vmem:[#allocation6 + $0x18] sm:$0xf]
    %v596 = vld [vmem:[#allocation6 + $0x1c] sm:$0xf]
    %v597 = vld [vmem:[#allocation6 + $0x20] sm:$0xf]
    %v598 = vld [vmem:[#allocation6 + $0x24] sm:$0xf]
    %v599 = vld [vmem:[#allocation6 + $0x28] sm:$0xf]
    %v600 = vld [vmem:[#allocation6 + $0x2c] sm:$0xf]
    %v601 = vld [vmem:[#allocation6 + $0x30] sm:$0xf]
    %v602 = vld [vmem:[#allocation6 + $0x34] sm:$0xf]
    %v603 = vld [vmem:[#allocation6 + $0x38] sm:$0xf]
    %v604 = vld [vmem:[#allocation6 + $0x3c] sm:$0xf]
    %v605 = vld [vmem:[%s4] sm:$0x1]
    %v607 = vlaneseq
    %v608 = vshrl.u32 %v607, 7
    %v609 = vsub.s32 0, %v608
    %v610 = vrot.slane %v605, %v609
    %v628 = vunpack.c.l.b16 %v589
    %v629 = vunpack.c.l.b16 %v590
    %v630 = vunpack.c.l.b16 %v591
    %v631 = vunpack.c.l.b16 %v592
    %v632 = vunpack.c.l.b16 %v593
    %v633 = vunpack.c.l.b16 %v594
    %v634 = vunpack.c.l.b16 %v595
    %v635 = vunpack.c.l.b16 %v596
    %v636 = vunpack.c.l.b16 %v597
    %v637 = vunpack.c.l.b16 %v598
    %v638 = vunpack.c.l.b16 %v599
    %v639 = vunpack.c.l.b16 %v600
    %v640 = vunpack.c.l.b16 %v601
    %v641 = vunpack.c.l.b16 %v602
    %v642 = vunpack.c.l.b16 %v603
    %v643 = vunpack.c.l.b16 %v604
    %v644 = vpack.c.b16 %v629, %v628
    %v645 = vpack.c.b16 %v631, %v630
    %v646 = vpack.c.b16 %v633, %v632
    %v647 = vpack.c.b16 %v635, %v634
    %v648 = vpack.c.b16 %v637, %v636
    %v649 = vpack.c.b16 %v639, %v638
    %v650 = vpack.c.b16 %v641, %v640
    %v651 = vpack.c.b16 %v643, %v642
    %660 = vmatprep.subr.bf16.mxu0 0
    %661 = vmatpush1.bf16.msra.mxu0 %v651
    %662 = vmatprep.subr.bf16.mxu0 0
    %663 = vmatpush1.bf16.msra.mxu0 %v650
    %664 = vmatprep.subr.bf16.mxu0 0
    %665 = vmatpush1.bf16.msra.mxu0 %v649
    %666 = vmatprep.subr.bf16.mxu0 0
    %667 = vmatpush1.bf16.msra.mxu0 %v648
    %668 = vmatprep.subr.bf16.mxu0 0
    %669 = vmatpush1.bf16.msra.mxu0 %v647
    %670 = vmatprep.subr.bf16.mxu0 0
    %671 = vmatpush1.bf16.msra.mxu0 %v646
    %672 = vmatprep.subr.bf16.mxu0 0
    %673 = vmatpush1.bf16.msra.mxu0 %v645
    %674 = vmatprep.subr.bf16.mxu0 0
    %675 = vmatpush1.bf16.msra.mxu0 %v644
    %676 = vmatprep.subr.bf16.mxu0 0
    %677 = vmatpush2.bf16.msra.mxu0 0
    %678 = vmatprep.subr.bf16.mxu0 0
    %679 = vmatpush2.bf16.msra.mxu0 0
    %680 = vmatprep.subr.bf16.mxu0 0
    %681 = vmatpush2.bf16.msra.mxu0 0
    %682 = vmatprep.subr.bf16.mxu0 0
    %683 = vmatpush2.bf16.msra.mxu0 0
    %684 = vmatprep.subr.bf16.mxu0 0
    %685 = vmatpush2.bf16.msra.mxu0 0
    %686 = vmatprep.subr.bf16.mxu0 0
    %687 = vmatpush2.bf16.msra.mxu0 0
    %688 = vmatprep.subr.bf16.mxu0 0
    %689 = vmatpush2.bf16.msra.mxu0 0
    %690 = vmatprep.subr.bf16.mxu0 0
    %691 = vmatpush2.bf16.msra.mxu0 0
    %692 = vmatprep.mubr.bf16.mxu0 0
    %693 = vmatmul.mubr.bf16.gmra.mxu0 %v588
    %v694 = vpop.f32.mrf.mxu0
    %v695 = vadd.f32 %v610, %v694
    %v696 = vpop.f32.mrf.mxu0
    %v697 = vpop.f32.mrf.mxu0
    %v698 = vpop.f32.mrf.mxu0
    %699 = vdwg.mxu0
    %v700 = vpack.c.bf16 %v695, %v695
    %701 = vst [vmem:[%s5] sm:$0xf] %v700
    // Predicated region
    $region34: #{fn_cls_head.1} parent=1 // pred_check
      _
    $region35: #{fn_cls_head.1} parent=1 // pred_check_branch
      %703 = sbr.rel (0) target = $region37
    $region36: #{fn_cls_head.1} parent=1 // pred_region
      _
    $region37: #{fn_cls_head.1} parent=1 // pred_fallthru
      _
    // Predicated region
    $region38: #{fn_cls_head.1} parent=1 // pred_check
      _
    $region39: #{fn_cls_head.1} parent=1 // pred_check_branch
      %705 = sbr.rel (0) target = $region41
    $region40: #{fn_cls_head.1} parent=1 // pred_region
      _
    $region41: #{fn_cls_head.1} parent=1 // pred_fallthru
      _
    %706 = vsyncpa [#allocation3], 1
    %707 = vsyncpa [#allocation5], 1

</llo_original>
